<compile_context>
chip_gen: v5e
topology: v5e:2x2
jax: 0.10.0
libtpu: 0.0.40
codegen_flags: <defaults>
</compile_context>

<pallas_src>
import functools

import jax
import jax.numpy as jnp
from jax import lax
from jax.experimental import pallas as pl
from jax.experimental.pallas import tpu as pltpu


def _round_up(x: int, m: int) -> int:
    return ((x + m - 1) // m) * m


# ---------------------------------------------------------------------------
# Kernels
# ---------------------------------------------------------------------------
def _single_block_kernel(x_ref, w_ref, b_ref, o_ref):
    """Whole (padded) problem in VMEM: one MXU pass + f32 bias add."""
    acc = lax.dot_general(
        x_ref[...], w_ref[...],
        dimension_numbers=(((1,), (1,)), ((), ())),   # contract on n_in axis
        preferred_element_type=jnp.float32)
    o_ref[...] = (acc + b_ref[...].astype(jnp.float32)).astype(o_ref.dtype)


def _tiled_kernel(x_ref, w_ref, b_ref, o_ref, acc_ref):
    """(M, N, K)-tiled matmul; bias added once in the k == last finalize."""
    k = pl.program_id(2)

    @pl.when(k == 0)
    def _init():
        acc_ref[...] = jnp.zeros_like(acc_ref)

    acc_ref[...] += lax.dot_general(
        x_ref[...], w_ref[...],
        dimension_numbers=(((1,), (1,)), ((), ())),   # contract on n_in axis
        preferred_element_type=jnp.float32)

    @pl.when(k == pl.num_programs(2) - 1)
    def _finalize():
        o_ref[...] = (acc_ref[...] + b_ref[...].astype(jnp.float32)
                      ).astype(o_ref.dtype)


# ---------------------------------------------------------------------------
# Wrapper
# ---------------------------------------------------------------------------
@functools.partial(jax.jit, static_argnames=("tm", "tn", "tk"))
def perceptron_forward(x, weight, bias, *, tm=256, tn=256, tk=512):
    """x: (B, n_in); weight: (n_out, n_in) [PyTorch layout]; bias: (n_out,)."""
    B, n_in = x.shape
    n_out = weight.shape[0]

    # Effective tile sizes, clamped to the HW-aligned problem size.
    tm_e = min(tm, _round_up(B, 8))        # sublane-aligned M tile
    tn_e = min(tn, _round_up(n_out, 128))  # lane-dense N tile
    tk_e = min(tk, _round_up(n_in, 128))   # lane-dense K tile

    Mp = _round_up(B, tm_e)
    Np = _round_up(n_out, tn_e)
    Kp = _round_up(n_in, tk_e)

    # Zero-pad to tile boundaries (one-time glue; zeros don't change the dot).
    xp = x if (Mp == B and Kp == n_in) else jnp.pad(
        x, ((0, Mp - B), (0, Kp - n_in)))
    wp = weight if (Np == n_out and Kp == n_in) else jnp.pad(
        weight, ((0, Np - n_out), (0, Kp - n_in)))
    bp = (bias if Np == n_out else jnp.pad(bias, (0, Np - n_out))
          ).reshape(1, Np)

    grid = (Mp // tm_e, Np // tn_e, Kp // tk_e)

    if grid == (1, 1, 1):
        # Single tile: skip the grid/pipeline machinery entirely.
        out = pl.pallas_call(
            _single_block_kernel,
            out_shape=jax.ShapeDtypeStruct((Mp, Np), x.dtype),
            in_specs=[
                pl.BlockSpec(memory_space=pltpu.MemorySpace.VMEM),
                pl.BlockSpec(memory_space=pltpu.MemorySpace.VMEM),
                pl.BlockSpec(memory_space=pltpu.MemorySpace.VMEM),
            ],
            out_specs=pl.BlockSpec(memory_space=pltpu.MemorySpace.VMEM),
        )(xp, wp, bp)
    else:
        itemsize = jnp.dtype(x.dtype).itemsize
        vmem_bytes = (
            2 * (tm_e * tk_e + tn_e * tk_e + tn_e) * itemsize   # dbl-buffered in
            + 2 * tm_e * tn_e * itemsize                        # dbl-buffered out
            + tm_e * tn_e * 4)                                  # f32 accumulator
        vmem_limit = int(min(max(2 * vmem_bytes, 8 << 20), 48 << 20))

        out = pl.pallas_call(
            _tiled_kernel,
            out_shape=jax.ShapeDtypeStruct((Mp, Np), x.dtype),
            grid_spec=pltpu.PrefetchScalarGridSpec(
                num_scalar_prefetch=0,
                grid=grid,
                in_specs=[
                    pl.BlockSpec((tm_e, tk_e), lambda i, j, k: (i, k)),
                    pl.BlockSpec((tn_e, tk_e), lambda i, j, k: (j, k)),
                    pl.BlockSpec((1, tn_e), lambda i, j, k: (0, j)),
                ],
                out_specs=pl.BlockSpec((tm_e, tn_e), lambda i, j, k: (i, j)),
                scratch_shapes=[pltpu.VMEM((tm_e, tn_e), jnp.float32)],
            ),
            compiler_params=pltpu.CompilerParams(
                dimension_semantics=("parallel", "parallel", "arbitrary"),
                vmem_limit_bytes=vmem_limit,
            ),
        )(xp, wp, bp)

    # Slice away the lane / sublane padding.
    return out[:B, :n_out]


if __name__ == "__main__":
    key = jax.random.PRNGKey(0)

    # --- Small shapes consistent with the module: n_inputs=32, n_outputs=16 ---
    B, n_inputs, n_outputs = 8, 32, 16
    kx, kw, kb, key = jax.random.split(key, 4)
    bound = 1.0 / (n_inputs ** 0.5)
    weight = jax.random.uniform(kw, (n_outputs, n_inputs),
                                minval=-bound, maxval=bound, dtype=jnp.float32)
    bias = jax.random.uniform(kb, (n_outputs,),
                              minval=-bound, maxval=bound, dtype=jnp.float32)
    x = jax.random.normal(kx, (B, n_inputs), dtype=jnp.float32)

    y = jax.block_until_ready(perceptron_forward(x, weight, bias))
    y_ref = x @ weight.T + bias
    assert y.shape == (B, n_outputs)
    assert jnp.allclose(y, y_ref, atol=1e-5, rtol=1e-5)

    # --- Larger shapes to exercise the tiled (M, N, K) path ---
    B2, n_in2, n_out2 = 512, 1024, 384
    kx2, kw2, kb2, key = jax.random.split(key, 4)
    bound2 = 1.0 / (n_in2 ** 0.5)
    w2 = jax.random.uniform(kw2, (n_out2, n_in2),
                            minval=-bound2, maxval=bound2, dtype=jnp.float32)
    b2 = jax.random.uniform(kb2, (n_out2,),
                            minval=-bound2, maxval=bound2, dtype=jnp.float32)
    x2 = jax.random.normal(kx2, (B2, n_in2), dtype=jnp.float32)

    y2 = jax.block_until_ready(perceptron_forward(x2, w2, b2))
    y2_ref = jnp.dot(x2, w2.T, precision=lax.Precision.HIGHEST) + b2
    assert y2.shape == (B2, n_out2)
    assert jnp.allclose(y2, y2_ref, atol=1e-3, rtol=1e-3)

    print("KERNEL_OK")
</pallas_src>

<mosaic_0001>
module attributes {stable_mosaic.version = 11 : i64} {
  func.func @_single_block_kernel(%arg0: memref<8x128xf32, #tpu.memory_space<vmem>>, %arg1: memref<128x128xf32, #tpu.memory_space<vmem>>, %arg2: memref<1x128xf32, #tpu.memory_space<vmem>>, %arg3: memref<8x128xf32, #tpu.memory_space<vmem>>) attributes {dimension_semantics = [], scalar_prefetch = 0 : i64, scratch_operands = 0 : i64, tpu.core_type = #tpu.core_type<tc>} {
    %c0 = arith.constant 0 : index
    %c0_0 = arith.constant 0 : index
    %0 = vector.load %arg0[%c0, %c0_0] : memref<8x128xf32, #tpu.memory_space<vmem>>, vector<8x128xf32>
    %c0_1 = arith.constant 0 : index
    %c0_2 = arith.constant 0 : index
    %1 = vector.load %arg1[%c0_1, %c0_2] : memref<128x128xf32, #tpu.memory_space<vmem>>, vector<128x128xf32>
    %cst = arith.constant dense<0.000000e+00> : vector<8x128xf32>
    %2 = tpu.matmul %0, %1, %cst {dimension_numbers = #tpu.dot_dimension_numbers<[1], [1], [0], [0], [0, 0, 1, 0], [], []>} : vector<8x128xf32>, vector<128x128xf32>, vector<8x128xf32> -> vector<8x128xf32>
    %c0_3 = arith.constant 0 : index
    %c0_4 = arith.constant 0 : index
    %3 = vector.load %arg2[%c0_3, %c0_4] : memref<1x128xf32, #tpu.memory_space<vmem>>, vector<1x128xf32>
    %4 = vector.broadcast %3 : vector<1x128xf32> to vector<8x128xf32>
    %5 = arith.addf %2, %4 : vector<8x128xf32>
    %c0_5 = arith.constant 0 : index
    %c0_6 = arith.constant 0 : index
    %6 = vector.load %arg3[%c0_5, %c0_6] : memref<8x128xf32, #tpu.memory_space<vmem>>, vector<8x128xf32>
    tpu.vector_store %arg3[%c0_5, %c0_6], %5 {strides = array<i32>} : memref<8x128xf32, #tpu.memory_space<vmem>>, vector<8x128xf32>,
    return
  }
}

</mosaic_0001>

<llo_original>
// kernel: perceptron_forward.1
$region0: #{perceptron_forward.1}
  #allocation0 [shape = 'u32[]', space=smem, size = 0x4, offset = 0x4, fixed_abs, tag = 'smem constant byte address 0x4 - core index']
  #allocation1 [shape = 'u32[72,128]{1,0:T(1,128)}', space=vmem, size = 0x9000, scoped, tag = 'internal scratch']
  %s0 = inlined_call_operand.vmem [shape: f32[8,128], index: 0, kind: input, shape index: {}]
  %s1 = inlined_call_operand.vmem [shape: f32[128,128], index: 1, kind: input, shape index: {}]
  %s2 = inlined_call_operand.vmem [shape: f32[1,128], index: 2, kind: input, shape index: {}]
  %s3 = inlined_call_operand.hbm [shape: f32[8,128], index: 3, kind: output, shape index: {}]
  %s4 = sld [smem:[#allocation0]]
  $region22: #{perceptron_forward.1} parent=0
    _
  %s6 = ssub.s32 1, %s4
  %s7 = scalar_select 0, %s6, %s4
  $region1: #{perceptron_forward.1} parent=0
    #allocation2 [shape = 'u8[4096]{0}', space=vmem, size = 0x1000, scoped, tag = 'output window, operand 0, single buffered']
    #allocation3 [shape = 's32[1]{0}', space=sflag, size = 0x4, scoped, tag = 'scoped memory for perceptron_forward.1']
    %8 = vsyncpa [#allocation3], 0
    // Predicated region
    $region2: #{perceptron_forward.1} parent=1 // pred_check
      _
    $region3: #{perceptron_forward.1} parent=1 // pred_check_branch
      %10 = sbr.rel (0) target = $region5
    $region4: #{perceptron_forward.1} parent=1 // pred_region
      _
    $region5: #{perceptron_forward.1} parent=1 // pred_fallthru
      _
    // Predicated region
    $region6: #{perceptron_forward.1} parent=1 // pred_check
      _
    $region7: #{perceptron_forward.1} parent=1 // pred_check_branch
      %12 = sbr.rel (0) target = $region9
    $region8: #{perceptron_forward.1} parent=1 // pred_region
      _
    $region9: #{perceptron_forward.1} parent=1 // pred_fallthru
      _
    // Predicated region
    $region10: #{perceptron_forward.1} parent=1 // pred_check
      _
    $region11: #{perceptron_forward.1} parent=1 // pred_check_branch
      %14 = sbr.rel (0) target = $region13
    $region12: #{perceptron_forward.1} parent=1 // pred_region
      _
    $region13: #{perceptron_forward.1} parent=1 // pred_fallthru
      _
    %v15 = vld [vmem:[%s0] sm:$0xff]
    %v16 = vld [vmem:[%s1] sm:$0xff]
    %v17 = vld [vmem:[%s1 + $0x8] sm:$0xff]
    %v18 = vld [vmem:[%s1 + $0x10] sm:$0xff]
    %v19 = vld [vmem:[%s1 + $0x18] sm:$0xff]
    %v20 = vld [vmem:[%s1 + $0x20] sm:$0xff]
    %v21 = vld [vmem:[%s1 + $0x28] sm:$0xff]
    %v22 = vld [vmem:[%s1 + $0x30] sm:$0xff]
    %v23 = vld [vmem:[%s1 + $0x38] sm:$0xff]
    %v24 = vld [vmem:[%s1 + $0x40] sm:$0xff]
    %v25 = vld [vmem:[%s1 + $0x48] sm:$0xff]
    %v26 = vld [vmem:[%s1 + $0x50] sm:$0xff]
    %v27 = vld [vmem:[%s1 + $0x58] sm:$0xff]
    %v28 = vld [vmem:[%s1 + $0x60] sm:$0xff]
    %v29 = vld [vmem:[%s1 + $0x68] sm:$0xff]
    %v30 = vld [vmem:[%s1 + $0x70] sm:$0xff]
    %v31 = vld [vmem:[%s1 + $0x78] sm:$0xff]
    %v32 = vld [vmem:[%s2] sm:$0x1]
    %v34 = vperm.slane %v32, 0
    %36 = vmatpush.xpose.msra.mxu0 %v31
    %37 = vmatpush.xpose.msra.mxu0 %v30
    %38 = vmatpush.xpose.msra.mxu0 %v29
    %39 = vmatpush.xpose.msra.mxu0 %v28
    %40 = vmatpush.xpose.msra.mxu0 %v27
    %41 = vmatpush.xpose.msra.mxu0 %v26
    %42 = vmatpush.xpose.msra.mxu0 %v25
    %43 = vmatpush.xpose.msra.mxu0 %v24
    %44 = vmatpush.xpose.msra.mxu0 %v23
    %45 = vmatpush.xpose.msra.mxu0 %v22
    %46 = vmatpush.xpose.msra.mxu0 %v21
    %47 = vmatpush.xpose.msra.mxu0 %v20
    %48 = vmatpush.xpose.msra.mxu0 %v19
    %49 = vmatpush.xpose.msra.mxu0 %v18
    %50 = vmatpush.xpose.msra.mxu0 %v17
    %51 = vmatpush.xpose.msra.mxu0 %v16
    %52 = vmatmul.f32.gmra.mxu0 %v15
    %v53 = vpop.f32.mrf.mxu0
    %v54 = vadd.f32 %v34, %v53
    %55 = vdwg.mxu0
    %56 = vst [vmem:[#allocation2] sm:$0xff] %v54
    // Predicated region
    $region14: #{perceptron_forward.1} parent=1 // pred_check
      _
    $region15: #{perceptron_forward.1} parent=1 // pred_check_branch
      %58 = sbr.rel (0) target = $region17
    $region16: #{perceptron_forward.1} parent=1 // pred_region
      %60 = vsyncadd [#allocation3], 0
      %s62 = sshll.u32 [#allocation2], 4
      %s63 = int_to_ptr.vmem [resolvable:$true] %s62
      %s64 = sshll.u32 %s3, 4
      %s65 = int_to_ptr.hbm [resolvable:$true] %s64
      %67 = dma.vmem_to_hbm [thread:$0]  %s63, 128, %s65, [#allocation3]
    $region17: #{perceptron_forward.1} parent=1 // pred_fallthru
      _
    // Predicated region
    $region18: #{perceptron_forward.1} parent=1 // pred_check
      _
    $region19: #{perceptron_forward.1} parent=1 // pred_check_branch
      %69 = sbr.rel (0) target = $region21
    $region20: #{perceptron_forward.1} parent=1 // pred_region
      %71 = dma.done [#allocation3], 128
    $region21: #{perceptron_forward.1} parent=1 // pred_fallthru
      _
    %72 = vsyncpa [#allocation3], 1

</llo_original>
